<compile_context>
chip_gen: v7x
topology: tpu7x:2x2x1
jax: 0.10.0
libtpu: 0.0.40
codegen_flags: <defaults>
</compile_context>

<pallas_src>
import functools
import math

import jax
import jax.numpy as jnp
from jax.experimental import pallas as pl
from jax.experimental.pallas import tpu as pltpu


# ----------------------------------------------------------------------------
# Kernel
# ----------------------------------------------------------------------------

def _pos_enc_kernel(nl_ref, onehot_ref, freq_ref, phase_ref, o_ref, *, group):
    """Fused positional encoding on one packed row-strip.

    nl_ref:     (TB, group)   noise levels, `group` batch rows packed per row
    onehot_ref: (group, W)    constant replication matrix, W = group * dim
    freq_ref:   (1, W)        constant per-lane frequency table
    phase_ref:  (1, W)        constant per-lane phase (0 = sin half, pi/2 = cos half)
    o_ref:      (TB, W)       packed output block (lane-dense store)
    """
    nl = nl_ref[...].astype(jnp.float32)                         # (TB, group)
    if group == 1:
        nl_wide = nl                                             # (TB, 1) lane-broadcasts
    else:
        # Replicate each packed row's noise level across its `dim` lanes with a
        # tiny constant matmul on the otherwise-idle MXU.
        nl_wide = jnp.dot(nl, onehot_ref[...],
                          preferred_element_type=jnp.float32)    # (TB, W)

    # cos(x) == sin(x + pi/2): single transcendental per output element.
    ang = nl_wide * freq_ref[...] + phase_ref[...]
    o_ref[...] = jnp.sin(ang).astype(o_ref.dtype)                # one dense store


# ----------------------------------------------------------------------------
# Wrapper
# ----------------------------------------------------------------------------

def _choose_group(B, dim):
    """Largest divisor of B that packs the output row width toward 128 lanes."""
    if dim >= 128:
        return 1
    target = max(1, 128 // dim)
    for g in range(min(target, B), 0, -1):
        if B % g == 0:
            return g
    return 1


def _choose_row_tile(rows, row_tile):
    """8-aligned row tile, >= 2 grid steps when rows allow (v7x megacore)."""
    if rows <= 8:
        return rows                         # single full block (block == array)
    half = -(-rows // 2)                    # ceil(rows / 2)
    tb = ((half + 7) // 8) * 8              # 8-aligned sublane strips
    return max(8, min(row_tile, tb))


def positional_encoding(noise_level, dim, *, row_tile=1024):
    """noise_level: (B,) -> (B, dim), matching PositionalEncoding.forward."""
    assert dim % 2 == 0, "dim must be even"
    count = dim // 2
    B = noise_level.shape[0]

    g = _choose_group(B, dim)               # batch rows packed per output row
    Bp, W = B // g, g * dim                 # packed layout (Bp, W)

    # Constant per-lane tables: depend only on static dim / g, so XLA folds
    # them into the executable (no per-call HBM traffic beyond one tiny DMA).
    lane = jnp.arange(W)
    j = lane % dim                                             # position within a group
    idx = jnp.where(j < count, j, j - count).astype(jnp.float32)
    freq = jnp.exp((-math.log(10000.0) / count) * idx).reshape(1, W)
    phase = jnp.where(j < count, 0.0, math.pi / 2.0).astype(jnp.float32).reshape(1, W)
    onehot = (lane[None, :] // dim == jnp.arange(g)[:, None]).astype(jnp.float32)  # (g, W)

    nl_grp = noise_level.reshape(Bp, g)

    TB = _choose_row_tile(Bp, row_tile)
    grid = (pl.cdiv(Bp, TB),)               # ragged last tile is clipped by Pallas

    kernel = functools.partial(_pos_enc_kernel, group=g)
    out_packed = pl.pallas_call(
        kernel,
        out_shape=jax.ShapeDtypeStruct((Bp, W), noise_level.dtype),
        grid=grid,
        in_specs=[
            pl.BlockSpec((TB, g), lambda i: (i, 0)),   # noise levels (row strips)
            pl.BlockSpec((g, W), lambda i: (0, 0)),    # replication one-hot (resident)
            pl.BlockSpec((1, W), lambda i: (0, 0)),    # freq table (resident)
            pl.BlockSpec((1, W), lambda i: (0, 0)),    # phase table (resident)
        ],
        out_specs=pl.BlockSpec((TB, W), lambda i: (i, 0)),
        compiler_params=pltpu.CompilerParams(
            dimension_semantics=("parallel",)),
    )(nl_grp, onehot, freq, phase)

    # Contiguous row-major reshape back to the module's (B, dim) layout: free.
    return out_packed.reshape(B, dim)


# ----------------------------------------------------------------------------
# Reference (pure JAX) for correctness
# ----------------------------------------------------------------------------

def positional_encoding_ref(noise_level, dim):
    count = dim // 2
    step = jnp.arange(count, dtype=noise_level.dtype) / count
    enc = noise_level[:, None] * jnp.exp(-math.log(10000.0) * step[None, :])
    return jnp.concatenate([jnp.sin(enc), jnp.cos(enc)], axis=-1)


if __name__ == "__main__":
    key = jax.random.PRNGKey(0)
    k1, k2 = jax.random.split(key)

    # Small shapes consistent with the module: a batch of noise levels and an
    # even embedding dim (typical SR3 noise-embedding width).
    B, dim = 2, 32
    noise_level = jax.random.uniform(k1, (B,), dtype=jnp.float32)

    fwd = jax.jit(functools.partial(positional_encoding, dim=dim))
    out = jax.block_until_ready(fwd(noise_level))
    ref = positional_encoding_ref(noise_level, dim)
    assert out.shape == (B, dim)
    assert bool(jnp.all(jnp.isfinite(out)))
    assert bool(jnp.allclose(out, ref, atol=1e-5, rtol=1e-5))

    # Second small check exercising row packing (group=4, 128-wide lane-dense
    # stores) and a 2-step "parallel" grid.
    B2, dim2 = 64, 32
    nl2 = jax.random.uniform(k2, (B2,), dtype=jnp.float32)
    out2 = jax.block_until_ready(
        jax.jit(functools.partial(positional_encoding, dim=dim2))(nl2))
    ref2 = positional_encoding_ref(nl2, dim2)
    assert out2.shape == (B2, dim2)
    assert bool(jnp.allclose(out2, ref2, atol=1e-5, rtol=1e-5))

    print("KERNEL_OK")
</pallas_src>

<mosaic_0001>
module attributes {stable_mosaic.version = 11 : i64} {
  func.func @_pos_enc_kernel(%arg0: i32, %arg1: memref<1x2xf32, #tpu.memory_space<vmem>>, %arg2: memref<2x64xf32, #tpu.memory_space<vmem>>, %arg3: memref<1x64xf32, #tpu.memory_space<vmem>>, %arg4: memref<1x64xf32, #tpu.memory_space<vmem>>, %arg5: memref<1x64xf32, #tpu.memory_space<vmem>>) attributes {dimension_semantics = [#tpu.dimension_semantics<parallel>], iteration_bounds = array<i64: 1>, scalar_prefetch = 0 : i64, scratch_operands = 0 : i64, tpu.core_type = #tpu.core_type<tc>, window_params = [{transform_indices = @transform_0, window_bounds = array<i64: 1, 2>}, {pipeline_mode = #tpu.pipeline_mode<synchronous>, transform_indices = @transform_1, window_bounds = array<i64: 2, 64>}, {pipeline_mode = #tpu.pipeline_mode<synchronous>, transform_indices = @transform_2, window_bounds = array<i64: 1, 64>}, {pipeline_mode = #tpu.pipeline_mode<synchronous>, transform_indices = @transform_3, window_bounds = array<i64: 1, 64>}, {transform_indices = @transform_4, window_bounds = array<i64: 1, 64>}]} {
    %c0 = arith.constant 0 : index
    %c0_0 = arith.constant 0 : index
    %0 = vector.load %arg1[%c0, %c0_0] : memref<1x2xf32, #tpu.memory_space<vmem>>, vector<1x2xf32>
    %c0_1 = arith.constant 0 : index
    %c0_2 = arith.constant 0 : index
    %1 = vector.load %arg2[%c0_1, %c0_2] : memref<2x64xf32, #tpu.memory_space<vmem>>, vector<2x64xf32>
    %cst = arith.constant dense<0.000000e+00> : vector<1x64xf32>
    %2 = tpu.matmul %0, %1, %cst {dimension_numbers = #tpu.dot_dimension_numbers<[1], [0], [0], [1], [0, 0, 1, 1], [], []>} : vector<1x2xf32>, vector<2x64xf32>, vector<1x64xf32> -> vector<1x64xf32>
    %c0_3 = arith.constant 0 : index
    %c0_4 = arith.constant 0 : index
    %3 = vector.load %arg3[%c0_3, %c0_4] : memref<1x64xf32, #tpu.memory_space<vmem>>, vector<1x64xf32>
    %4 = arith.mulf %2, %3 : vector<1x64xf32>
    %c0_5 = arith.constant 0 : index
    %c0_6 = arith.constant 0 : index
    %5 = vector.load %arg4[%c0_5, %c0_6] : memref<1x64xf32, #tpu.memory_space<vmem>>, vector<1x64xf32>
    %6 = arith.addf %4, %5 : vector<1x64xf32>
    %7 = math.sin %6 : vector<1x64xf32>
    %c0_7 = arith.constant 0 : index
    %c0_8 = arith.constant 0 : index
    %8 = vector.load %arg5[%c0_7, %c0_8] : memref<1x64xf32, #tpu.memory_space<vmem>>, vector<1x64xf32>
    tpu.vector_store %arg5[%c0_7, %c0_8], %7 {strides = array<i32>} : memref<1x64xf32, #tpu.memory_space<vmem>>, vector<1x64xf32>,
    return
  }
  func.func @transform_0(%arg0: i32) -> (i32, i32) {
    %c0_i32 = arith.constant 0 : i32
    %c0_i32_0 = arith.constant 0 : i32
    return %arg0, %c0_i32 : i32, i32
  }
  func.func @transform_1(%arg0: i32) -> (i32, i32) {
    %c0_i32 = arith.constant 0 : i32
    %c0_i32_0 = arith.constant 0 : i32
    %c0_i32_1 = arith.constant 0 : i32
    return %c0_i32, %c0_i32_0 : i32, i32
  }
  func.func @transform_2(%arg0: i32) -> (i32, i32) {
    %c0_i32 = arith.constant 0 : i32
    %c0_i32_0 = arith.constant 0 : i32
    %c0_i32_1 = arith.constant 0 : i32
    return %c0_i32, %c0_i32_0 : i32, i32
  }
  func.func @transform_3(%arg0: i32) -> (i32, i32) {
    %c0_i32 = arith.constant 0 : i32
    %c0_i32_0 = arith.constant 0 : i32
    %c0_i32_1 = arith.constant 0 : i32
    return %c0_i32, %c0_i32_0 : i32, i32
  }
  func.func @transform_4(%arg0: i32) -> (i32, i32) {
    %c0_i32 = arith.constant 0 : i32
    %c0_i32_0 = arith.constant 0 : i32
    return %arg0, %c0_i32 : i32, i32
  }
}

</mosaic_0001>

<llo_original>
// kernel: positional_encoding.1
$region0: #{positional_encoding.1}
  #allocation0 [shape = 'u32[]', space=smem, size = 0x4, offset = 0x4, fixed_abs, tag = 'smem constant byte address 0x4 - core index']
  #allocation1 [shape = 'u32[144,128]{1,0:T(1,128)}', space=vmem, size = 0x12000, scoped, tag = 'internal scratch']
  %s0 = inlined_call_operand.vmem [shape: f32[1,2], index: 0, kind: input, shape index: {}]
  %s1 = inlined_call_operand.vmem [shape: f32[2,64], index: 1, kind: input, shape index: {}]
  %s2 = inlined_call_operand.vmem [shape: f32[1,64], index: 2, kind: input, shape index: {}]
  %s3 = inlined_call_operand.vmem [shape: f32[1,64], index: 3, kind: input, shape index: {}]
  %s4 = inlined_call_operand.vmem [shape: f32[1,64], index: 4, kind: output, shape index: {}]
  %s5 = sld [smem:[#allocation0]]
  $region26: #{positional_encoding.1} parent=0
    _
  %s7 = ssub.s32 1, %s5
  %s8 = scalar_select 0, %s7, %s5
  // Predicated region
  $region2: #{positional_encoding.1} parent=0 // pred_check
    _
  $region3: #{positional_encoding.1} parent=0 // pred_check_branch
    %10 = sbr.rel (0) target = $region5
  $region4: #{positional_encoding.1} parent=0 // pred_region
    _
  $region5: #{positional_encoding.1} parent=0 // pred_fallthru
    _
  // Predicated region
  $region6: #{positional_encoding.1} parent=0 // pred_check
    _
  $region7: #{positional_encoding.1} parent=0 // pred_check_branch
    %12 = sbr.rel (0) target = $region9
  $region8: #{positional_encoding.1} parent=0 // pred_region
    _
  $region9: #{positional_encoding.1} parent=0 // pred_fallthru
    _
  // Predicated region
  $region10: #{positional_encoding.1} parent=0 // pred_check
    _
  $region11: #{positional_encoding.1} parent=0 // pred_check_branch
    %14 = sbr.rel (0) target = $region13
  $region12: #{positional_encoding.1} parent=0 // pred_region
    _
  $region13: #{positional_encoding.1} parent=0 // pred_fallthru
    _
  // Predicated region
  $region14: #{positional_encoding.1} parent=0 // pred_check
    _
  $region15: #{positional_encoding.1} parent=0 // pred_check_branch
    %16 = sbr.rel (0) target = $region17
  $region16: #{positional_encoding.1} parent=0 // pred_region
    _
  $region17: #{positional_encoding.1} parent=0 // pred_fallthru
    _
  %v17 = vld [vmem:[%s0] sm:$0x1]
  %v18 = vld [vmem:[%s1] sm:$0x3]
  %vm19 = vcmask 15360
  %v21 = vsel %vm19, %v17, 0
  %vm23 = vcmask 1041408
  %v25 = vsel %vm23, %v18, 0
  %27 = vmatprep.subr.mxu0 0.0
  %28 = vmatpush1.msra.mxu0 %v25
  %29 = vmatprep.subr.mxu0 0.0
  %30 = vmatpush1.msra.mxu0 0.0
  %31 = vmatprep.subr.mxu0 0.0
  %32 = vmatpush1.msra.mxu0 0.0
  %33 = vmatprep.subr.mxu0 0.0
  %34 = vmatpush1.msra.mxu0 0.0
  %35 = vmatprep.subr.mxu0 0.0
  %36 = vmatpush1.msra.mxu0 0.0
  %37 = vmatprep.subr.mxu0 0.0
  %38 = vmatpush1.msra.mxu0 0.0
  %39 = vmatprep.subr.mxu0 0.0
  %40 = vmatpush1.msra.mxu0 0.0
  %41 = vmatprep.subr.mxu0 0.0
  %42 = vmatpush1.msra.mxu0 0.0
  %43 = vmatprep.subr.mxu0 0.0
  %44 = vmatpush1.msra.mxu0 0.0
  %45 = vmatprep.subr.mxu0 0.0
  %46 = vmatpush1.msra.mxu0 0.0
  %47 = vmatprep.subr.mxu0 0.0
  %48 = vmatpush1.msra.mxu0 0.0
  %49 = vmatprep.subr.mxu0 0.0
  %50 = vmatpush1.msra.mxu0 0.0
  %51 = vmatprep.subr.mxu0 0.0
  %52 = vmatpush1.msra.mxu0 0.0
  %53 = vmatprep.subr.mxu0 0.0
  %54 = vmatpush1.msra.mxu0 0.0
  %55 = vmatprep.subr.mxu0 0.0
  %56 = vmatpush1.msra.mxu0 0.0
  %57 = vmatprep.subr.mxu0 0.0
  %58 = vmatpush1.msra.mxu0 0.0
  %59 = vmatprep.subr.mxu0 0.0
  %60 = vmatpush1.msra.mxu0 0.0
  %61 = vmatprep.subr.mxu0 0.0
  %62 = vmatpush1.msra.mxu0 0.0
  %63 = vmatprep.subr.mxu0 0.0
  %64 = vmatpush1.msra.mxu0 0.0
  %65 = vmatprep.subr.mxu0 0.0
  %66 = vmatpush1.msra.mxu0 0.0
  %67 = vmatprep.subr.mxu0 0.0
  %68 = vmatpush1.msra.mxu0 0.0
  %69 = vmatprep.subr.mxu0 0.0
  %70 = vmatpush1.msra.mxu0 0.0
  %71 = vmatprep.subr.mxu0 0.0
  %72 = vmatpush1.msra.mxu0 0.0
  %73 = vmatprep.subr.mxu0 0.0
  %74 = vmatpush1.msra.mxu0 0.0
  %75 = vmatprep.subr.mxu0 0.0
  %76 = vmatpush1.msra.mxu0 0.0
  %77 = vmatprep.subr.mxu0 0.0
  %78 = vmatpush1.msra.mxu0 0.0
  %79 = vmatprep.subr.mxu0 0.0
  %80 = vmatpush1.msra.mxu0 0.0
  %81 = vmatprep.subr.mxu0 0.0
  %82 = vmatpush1.msra.mxu0 0.0
  %83 = vmatprep.subr.mxu0 0.0
  %84 = vmatpush1.msra.mxu0 0.0
  %85 = vmatprep.subr.mxu0 0.0
  %86 = vmatpush1.msra.mxu0 0.0
  %87 = vmatprep.subr.mxu0 0.0
  %88 = vmatpush1.msra.mxu0 0.0
  %89 = vmatprep.subr.mxu0 0.0
  %90 = vmatpush1.msra.mxu0 0.0
  %91 = vmatprep.mubr.f32.mxu0 0.0
  %92 = vmatmul.mubr.f32.gmra.mrb[0].mxu0 %v21
  %v93 = vpop.f32.mrb[0].mxu0
  %v94 = vadd.f32 0.0, %v93
  %v95 = vpop.f32.mrb[0].mxu0
  %96 = vdwg.mxu0
  %v97 = vld [vmem:[%s2] sm:$0x1]
  %v98 = vmul.f32 %v94, %v97
  %v99 = vld [vmem:[%s3] sm:$0x1]
  %v100 = vadd.f32 %v98, %v99
  %v101 = vand.u32 2147483647, %v100
  %vm102 = vcmp.le.f32.partialorder %v101, 0.7853982
  %vm103 = vcmp.lt.s32.totalorder %v100, 0
  %v104 = vand.u32 %v100, 2139095040
  %v105 = vshrl.u32 %v104, 23
  %v106 = vsub.s32 %v105, 127
  %v107 = vand.u32 2147483647, %v100
  %v108 = vand.u32 %v107, 8388607
  %v109 = vor.u32 %v108, 8388608
  %v110 = vsub.s32 0, %v109
  %v111 = vadd.s32 %v106, 1
  %vm112 = vcmp.gt.s32.totalorder %v111, 0
  %v113 = vsel %vm112, %v111, 0
  %v114 = vshrl.u32 %v113, 5
  %v115 = vand.u32 %v113, 31
  %v116 = vsub.s32 32, %v115
  %v117 = vshrl.u32 683565275, %v116
  %v118 = vshll.u32 683565275, %v115
  %v119 = vshrl.u32 2475754826, %v116
  %v120 = vor.u32 %v118, %v119
  %v121 = vshll.u32 2475754826, %v115
  %v122 = vshrl.u32 2131351028, %v116
  %v123 = vor.u32 %v121, %v122
  %v124 = vshll.u32 2131351028, %v115
  %v125 = vshrl.u32 2102212464, %v116
  %v126 = vor.u32 %v124, %v125
  %v127 = vshll.u32 2102212464, %v115
  %v128 = vshrl.u32 920167782, %v116
  %v129 = vor.u32 %v127, %v128
  %v130 = vshll.u32 920167782, %v115
  %v131 = vshrl.u32 1326507024, %v116
  %v132 = vor.u32 %v130, %v131
  %vm133 = vcmp.lt.s32.totalorder %v114, 1
  %vm134 = vcmp.lt.s32.totalorder %v114, 2
  %vm135 = vcmp.lt.s32.totalorder %v114, 3
  %vm136 = vcmp.lt.s32.totalorder %v114, 4
  %v137 = vsel %vm133, %v117, %v120
  %v138 = vsel %vm136, %v126, 2102212464
  %v139 = vsel %vm135, %v123, %v138
  %v140 = vsel %vm134, %v137, %v139
  %v141 = vsel %vm133, %v120, %v123
  %v142 = vsel %vm136, %v129, 920167782
  %v143 = vsel %vm135, %v126, %v142
  %v144 = vsel %vm134, %v141, %v143
  %v145 = vsel %vm133, %v123, %v126
  %v146 = vsel %vm136, %v132, 1326507024
  %v147 = vsel %vm135, %v129, %v146
  %v148 = vsel %vm134, %v145, %v147
  %v149 = vshll.u32 %v109, 8
  %v150 = vmul.u32.u64.compose %v149, %v148
  %v151 = vextract.low.u32 %v150
  %v152 = vextract.high.u32 %v150
  %v153 = vmul.u32.u64.compose %v149, %v144
  %v154 = vextract.low.u32 %v153
  %v155 = vextract.high.u32 %v153
  %v156 = vmul.u32 %v149, %v140
  %v157 = vadd.s32 %v152, %v154
  %vm158 = vc.u32 %v152, %v154
  %v159 = vadd.s32 %v155, 1
  %v160 = vsel %vm158, %v159, %v155
  %v161 = vadd.s32 %v156, %v160
  %v162 = vadd.s32 %v161, 536870912
  %v163 = vshrl.u32 %v162, 30
  %v164 = vshll.u32 %v163, 30
  %v165 = vsub.s32 %v161, %v164
  %vm166 = vcmp.lt.s32.totalorder %v165, 0
  %v167 = vsub.s32 0, %v165
  %v168 = vsel %vm166, %v167, %v165
  %v169 = vclz %v168
  %v170 = vsub.s32 %v169, 2
  %vm171 = vcmp.gt.s32.totalorder 0, %v170
  %v172 = vsel %vm171, 0, %v170
  %v173 = vsub.s32 32, %v172
  %v174 = vshll.u32 %v165, %v172
  %v175 = vshrl.u32 %v157, %v173
  %v176 = vor.u32 %v174, %v175
  %v177 = vsub.s32 4294967266, %v172
  %v178 = vadd.s32 %v177, 127
  %v179 = vshll.u32 %v178, 23
  %v180 = vor.u32 4788187, %v179
  %v181 = vand.u32 2147483647, %v180
  %v183 = vcvt.s32.f32 %v176
  %v184 = vmul.f32 %v183, %v181
  %v185 = vxor.u32 %v184, 2147483648
  %v186 = vsel %vm103, %v185, %v184
  %v187 = vsub.s32 4, %v163
  %v188 = vsel %vm103, %v187, %v163
  %v189 = vsel %vm102, %v100, %v186
  %v190 = vsel %vm102, 0, %v188
  %v191 = vcosq.f32.pop %v189
  %v192 = vsinq.f32.pop %v189
  %vm193 = vweird.f32 %v100
  %v194 = vadd.s32 %v190, 3
  %v195 = vand.u32 %v194, 3
  %vm196 = vcmp.lt.s32.totalorder %v195, 2
  %vm197 = vcmp.eq.s32.totalorder %v195, 0
  %v198 = vxor.u32 %v192, 2147483648
  %v199 = vsel %vm197, %v191, %v198
  %vm200 = vcmp.eq.s32.totalorder %v195, 2
  %v201 = vxor.u32 %v191, 2147483648
  %v202 = vsel %vm200, %v201, %v192
  %v203 = vsel %vm196, %v199, %v202
  %v204 = vsel %vm193, nan, %v203
  %vm205 = vcmask 516096
  %206 = vst.msk [vmem:[%s4] sm:$0x1] %vm205, %v204
  // Predicated region
  $region18: #{positional_encoding.1} parent=0 // pred_check
    _
  $region19: #{positional_encoding.1} parent=0 // pred_check_branch
    %208 = sbr.rel (0) target = $region21
  $region20: #{positional_encoding.1} parent=0 // pred_region
    _
  $region21: #{positional_encoding.1} parent=0 // pred_fallthru
    _
  // Predicated region
  $region22: #{positional_encoding.1} parent=0 // pred_check
    _
  $region23: #{positional_encoding.1} parent=0 // pred_check_branch
    %210 = sbr.rel (0) target = $region25
  $region24: #{positional_encoding.1} parent=0 // pred_region
    _
  $region25: #{positional_encoding.1} parent=0 // pred_fallthru
    _

</llo_original>
